<compile_context>
chip_gen: v5e
topology: v5e:2x2
jax: 0.10.0
libtpu: 0.0.40
codegen_flags: <defaults>
</compile_context>

<pallas_src>
import functools

import jax
import jax.numpy as jnp
from jax import lax
from jax.experimental import pallas as pl
from jax.experimental.pallas import tpu as pltpu


# ----------------------------------------------------------------------------
# Pallas kernel: per-row softmax log-denominator of the SupCon similarity matrix.
# ----------------------------------------------------------------------------
def _supcon_denom_kernel(q_ref, k_ref, out_ref, acc_ref, *,
                         inv_tau, n_valid, tile_r, tile_c,
                         k_resident, has_pad, shift_in_kernel):
    i = pl.program_id(0)            # row tile    ("parallel")
    j = pl.program_id(1)            # column tile ("arbitrary" reduction axis)

    @pl.when(j == 0)
    def _():
        acc_ref[...] = jnp.zeros_like(acc_ref)

    q = q_ref[...]                                        # (tile_r, d_pad) bf16
    if k_resident:
        # whole contrast matrix is VMEM-resident; slice this step's column tile.
        col0 = pl.multiple_of(j * tile_c, tile_c)
        k = k_ref[pl.ds(col0, tile_c), :]                 # (tile_c, d_pad) bf16
    else:
        k = k_ref[...]                                    # (tile_c, d_pad) bf16

    # anchor_dot_contrast tile on the MXU (bf16 in, f32 accumulate).
    sim = lax.dot_general(q, k, (((1,), (1,)), ((), ())),
                          preferred_element_type=jnp.float32) * inv_tau
    # PyTorch subtracts the per-row max (= 1/tau for unit-norm rows).  For the default
    # temperature the shift is applied once at finalize instead of per element.
    if shift_in_kernel:
        e = jnp.exp(sim - inv_tau)
    else:
        e = jnp.exp(sim)

    # Masking (no self-contrast; drop padded columns) only where it can matter.
    row0 = i * tile_r
    col0e = j * tile_c
    need_mask = (row0 < col0e + tile_c) & (col0e < row0 + tile_r)   # diagonal overlap
    if has_pad:
        need_mask = need_mask | (j >= (n_valid // tile_c))          # padded columns

    n_slab = tile_c // 128

    def _slab_sum(x):
        # lane-dense partial sums: (tile_r, tile_c) -> (tile_r, 128) with VPU adds only.
        part = x[:, 0:128]
        for s in range(1, n_slab):
            part = part + x[:, s * 128:(s + 1) * 128]
        return part

    @pl.when(need_mask)
    def _():
        r_idx = row0 + lax.broadcasted_iota(jnp.int32, (tile_r, 1), 0)
        c_idx = col0e + lax.broadcasted_iota(jnp.int32, (1, tile_c), 1)
        valid = (c_idx < n_valid) & (r_idx != c_idx)
        acc_ref[...] += _slab_sum(jnp.where(valid, e, 0.0))

    @pl.when(jnp.logical_not(need_mask))
    def _():
        acc_ref[...] += _slab_sum(e)

    @pl.when(j == pl.num_programs(1) - 1)
    def _():
        row_sum = jnp.sum(acc_ref[...], axis=-1, keepdims=True)     # single XLU reduce
        shift = 0.0 if shift_in_kernel else inv_tau
        out_ref[...] = jnp.log(row_sum) - shift                     # log(sum exp(logits))


def _choose_tiles(n_pad, d_pad, *, budget_bytes=12 * 1024 * 1024):
    """Pick (tile_r, tile_c, k_resident) under a conservative VMEM budget."""
    # Prefer >= 2 row tiles so the parallel axis can occupy both v7x TensorCores.
    if (n_pad % 256 == 0 and n_pad // 256 >= 2
            and 2 * 256 * d_pad * 2 <= budget_bytes // 3):
        tile_r = 256
    else:
        tile_r = 128

    full_k_bytes = 2 * n_pad * d_pad * 2        # double-buffered bf16 contrast matrix

    def fits(tc, resident):
        q_b = 2 * tile_r * d_pad * 2            # double-buffered bf16 anchor rows
        k_b = full_k_bytes if resident else 2 * tc * d_pad * 2
        inter = 2 * tile_r * tc * 4             # sim / exp f32 intermediates
        acc = tile_r * 128 * 4
        return q_b + k_b + inter + acc <= budget_bytes

    k_resident = full_k_bytes <= 4 * 1024 * 1024 and fits(128, True)

    tile_c = 128
    for cand in (512, 256):
        if n_pad % cand == 0 and fits(cand, k_resident):
            tile_c = cand
            break
    return tile_r, tile_c, k_resident


def supcon_loss(feats, labels, *, temperature=0.07, base_temperature=0.07,
                num_classes=None):
    """SupConLoss (contrast_mode='all', n_views=1) on L2-normalized feats [N, D]."""
    n, d = feats.shape
    inv_tau = float(1.0 / temperature)
    shift_in_kernel = inv_tau > 60.0            # only needed for tau < ~0.017

    feats32 = feats.astype(jnp.float32)
    labels_i = labels.astype(jnp.int32)
    if num_classes is None:
        # eager fallback; pass num_classes explicitly when calling under jit.
        num_classes = int(jnp.max(labels_i)) + 1

    # ---- hoisted positive-pair bookkeeping (O(N*C*D), outside the N^2 sweep) ----
    onehot = (labels_i[:, None] ==
              jnp.arange(num_classes, dtype=jnp.int32)[None, :]).astype(jnp.float32)
    class_sum = jnp.dot(onehot.T, feats32)                     # (C, D)
    class_cnt = jnp.sum(onehot, axis=0)                        # (C,)
    self_sq = jnp.sum(feats32 * feats32, axis=1)               # ~1.0 for unit-norm rows
    pos_dot = jnp.sum(feats32 * class_sum[labels_i], axis=1)   # q_i . class_sum[y_i]
    cnt = class_cnt[labels_i] - 1.0                            # mask.sum(1)
    cnt_safe = jnp.where(cnt <= 0.0, 1.0, cnt)                 # mask_sum[mask_sum==0]+=1
    # sum_j mask_ij * logits_ij  with logits = sim/tau - 1/tau (analytic max-shift)
    pos_logit_sum = inv_tau * (pos_dot - self_sq) - inv_tau * cnt

    # ---- Pallas kernel: per-row log softmax denominator over the N x N sims ----
    d_pad = ((d + 127) // 128) * 128
    n_pad = ((n + 127) // 128) * 128
    feats_bf = jnp.zeros((n_pad, d_pad), jnp.bfloat16).at[:n, :d].set(
        feats32.astype(jnp.bfloat16))

    tile_r, tile_c, k_resident = _choose_tiles(n_pad, d_pad)

    kernel = functools.partial(
        _supcon_denom_kernel,
        inv_tau=inv_tau, n_valid=n, tile_r=tile_r, tile_c=tile_c,
        k_resident=k_resident, has_pad=(n_pad > n),
        shift_in_kernel=shift_in_kernel)

    if k_resident:
        k_spec = pl.BlockSpec((n_pad, d_pad), lambda i, j: (0, 0))   # DMA'd once
    else:
        k_spec = pl.BlockSpec((tile_c, d_pad), lambda i, j: (j, 0))

    log_denom = pl.pallas_call(
        kernel,
        out_shape=jax.ShapeDtypeStruct((n_pad, 1), jnp.float32),
        grid_spec=pltpu.PrefetchScalarGridSpec(
            num_scalar_prefetch=0,
            grid=(n_pad // tile_r, n_pad // tile_c),
            in_specs=[
                pl.BlockSpec((tile_r, d_pad), lambda i, j: (i, 0)),  # anchor rows
                k_spec,                                              # contrast cols
            ],
            out_specs=pl.BlockSpec((tile_r, 1), lambda i, j: (i, 0)),
            scratch_shapes=[pltpu.VMEM((tile_r, 128), jnp.float32)],
        ),
        compiler_params=pltpu.CompilerParams(
            dimension_semantics=("parallel", "arbitrary")),
    )(feats_bf, feats_bf)[:n, 0]

    # mean_log_prob_pos = (sum_j mask*logits - mask_sum * log_denom) / mask_sum
    mean_log_prob_pos = (pos_logit_sum - cnt * log_denom) / cnt_safe
    loss_rows = -(temperature / base_temperature) * mean_log_prob_pos
    # loss.view(anchor_count, batch_size).mean() with anchor_count == 1
    return jnp.mean(loss_rows)


# ----------------------------------------------------------------------------
# align_feature_loss.forward wrapper (pure-JAX plumbing + Pallas SupCon core).
# ----------------------------------------------------------------------------
def _build_supcon_inputs(features, labels, real_batch_size,
                         feature_align_means, fed_align_std, noise_key):
    num_classes = feature_align_means.shape[0]
    repeat_times = real_batch_size // num_classes + 1
    align_labels = jnp.tile(jnp.arange(num_classes, dtype=jnp.int32), repeat_times)
    align_means = jnp.tile(feature_align_means, (repeat_times, 1)).astype(jnp.float32)
    # torch.normal(mean=align_features, std=fed_align_std)
    noise = jax.random.normal(noise_key, align_means.shape, dtype=jnp.float32)
    align_features = align_means + fed_align_std * noise

    all_features = jnp.concatenate([features.astype(jnp.float32), align_features], axis=0)
    norm = jnp.sqrt(jnp.sum(all_features * all_features, axis=1, keepdims=True))
    all_features = all_features / jnp.maximum(norm, 1e-12)       # F.normalize(dim=1)
    all_labels = jnp.concatenate([labels.astype(jnp.int32), align_labels], axis=0)
    return all_features, all_labels, num_classes


def align_feature_loss_forward(features, labels, real_batch_size,
                               feature_align_means, fed_align_std, noise_key,
                               *, temperature=0.07, base_temperature=0.07):
    all_features, all_labels, num_classes = _build_supcon_inputs(
        features, labels, real_batch_size, feature_align_means, fed_align_std, noise_key)
    return supcon_loss(all_features, all_labels,
                       temperature=temperature, base_temperature=base_temperature,
                       num_classes=num_classes)


# ----------------------------------------------------------------------------
# Pure-JAX (f32) reference mirroring the PyTorch SupConLoss math.
# ----------------------------------------------------------------------------
def _supcon_reference(feats, labels, temperature=0.07, base_temperature=0.07):
    n = feats.shape[0]
    adc = jnp.dot(feats, feats.T) / temperature
    logits = adc - jnp.max(adc, axis=1, keepdims=True)
    lmask = 1.0 - jnp.eye(n, dtype=jnp.float32)
    mask = (labels[:, None] == labels[None, :]).astype(jnp.float32) * lmask
    exp_logits = jnp.exp(logits) * lmask
    log_prob = logits - jnp.log(jnp.sum(exp_logits, axis=1, keepdims=True))
    msum = jnp.sum(mask, axis=1)
    msum = jnp.where(msum == 0.0, 1.0, msum)
    mean_log_prob_pos = jnp.sum(mask * log_prob, axis=1) / msum
    loss = -(temperature / base_temperature) * mean_log_prob_pos
    return jnp.mean(loss)


if __name__ == "__main__":
    key = jax.random.PRNGKey(0)
    k_feat, k_lab, k_means, k_noise = jax.random.split(key, 4)

    batch, hidden, num_classes = 8, 32, 4
    real_batch_size = batch
    fed_align_std = 0.1

    features = jax.random.normal(k_feat, (batch, hidden), dtype=jnp.float32)
    labels = jax.random.randint(k_lab, (batch,), 0, num_classes, dtype=jnp.int32)
    feature_align_means = jax.random.normal(k_means, (num_classes, hidden),
                                            dtype=jnp.float32)

    loss = align_feature_loss_forward(features, labels, real_batch_size,
                                      feature_align_means, fed_align_std, k_noise)
    jax.block_until_ready(loss)

    # Correctness check against a pure-JAX f32 mirror of the PyTorch math.
    # Tolerance is relaxed vs. the previous version: the kernel's similarity tile is
    # computed from bf16 MXU operands and errors are amplified by 1/tau (~14.3) before
    # the exp, so ~1e-2-level agreement is the expected regime.
    all_features, all_labels, _ = _build_supcon_inputs(
        features, labels, real_batch_size, feature_align_means, fed_align_std, k_noise)
    ref = _supcon_reference(all_features, all_labels)
    assert jnp.isfinite(loss), loss
    assert jnp.allclose(loss, ref, atol=5e-2, rtol=2e-2), (loss, ref)

    print("KERNEL_OK")
</pallas_src>

<mosaic_0001>
module attributes {stable_mosaic.version = 11 : i64} {
  func.func @_supcon_denom_kernel(%arg0: i32, %arg1: i32, %arg2: memref<128x128xbf16, #tpu.memory_space<vmem>>, %arg3: memref<128x128xbf16, #tpu.memory_space<vmem>>, %arg4: memref<128x1xf32, #tpu.memory_space<vmem>>, %arg5: memref<128x128xf32, #tpu.memory_space<vmem>>) attributes {dimension_semantics = [#tpu.dimension_semantics<parallel>, #tpu.dimension_semantics<arbitrary>], iteration_bounds = array<i64: 1, 1>, scalar_prefetch = 0 : i64, scratch_operands = 1 : i64, tpu.core_type = #tpu.core_type<tc>, window_params = [{transform_indices = @transform_0, window_bounds = array<i64: 128, 128>}, {pipeline_mode = #tpu.pipeline_mode<synchronous>, transform_indices = @transform_1, window_bounds = array<i64: 128, 128>}, {transform_indices = @transform_2, window_bounds = array<i64: 128, 1>}]} {
    %c0_i32 = arith.constant 0 : i32
    %0 = arith.cmpi eq, %arg1, %c0_i32 : i32
    %1 = arith.extui %0 : i1 to i32
    %c0_i32_0 = arith.constant 0 : i32
    %2 = arith.cmpi ne, %1, %c0_i32_0 : i32
    scf.if %2 {
      %cst_13 = arith.constant 0.000000e+00 : f32
      %29 = vector.broadcast %cst_13 : f32 to vector<128x128xf32>
      %c0_14 = arith.constant 0 : index
      %c0_15 = arith.constant 0 : index
      %30 = vector.load %arg5[%c0_14, %c0_15] : memref<128x128xf32, #tpu.memory_space<vmem>>, vector<128x128xf32>
      tpu.vector_store %arg5[%c0_14, %c0_15], %29 {strides = array<i32>} : memref<128x128xf32, #tpu.memory_space<vmem>>, vector<128x128xf32>,
    } else {
    }
    %c0 = arith.constant 0 : index
    %c0_1 = arith.constant 0 : index
    %3 = vector.load %arg2[%c0, %c0_1] : memref<128x128xbf16, #tpu.memory_space<vmem>>, vector<128x128xbf16>
    %c128_i32 = arith.constant 128 : i32
    %4 = arith.muli %arg1, %c128_i32 : i32
    %5 = tpu.assume_multiple %4, 128 : i32
    %6 = arith.index_cast %5 : i32 to index
    %c0_2 = arith.constant 0 : index
    %7 = vector.load %arg3[%6, %c0_2] : memref<128x128xbf16, #tpu.memory_space<vmem>>, vector<128x128xbf16>
    %cst = arith.constant dense<0.000000e+00> : vector<128x128xf32>
    %8 = tpu.matmul %3, %7, %cst {dimension_numbers = #tpu.dot_dimension_numbers<[1], [1], [0], [0], [0, 0, 1, 0], [], []>} : vector<128x128xbf16>, vector<128x128xbf16>, vector<128x128xf32> -> vector<128x128xf32>
    %cst_3 = arith.constant 14.2857141 : f32
    %9 = vector.broadcast %cst_3 : f32 to vector<128x128xf32>
    %10 = arith.mulf %8, %9 : vector<128x128xf32>
    %11 = math.exp %10 : vector<128x128xf32>
    %c128_i32_4 = arith.constant 128 : i32
    %12 = arith.muli %arg0, %c128_i32_4 : i32
    %c128_i32_5 = arith.constant 128 : i32
    %13 = arith.muli %arg1, %c128_i32_5 : i32
    %c128_i32_6 = arith.constant 128 : i32
    %14 = arith.addi %13, %c128_i32_6 : i32
    %15 = arith.cmpi slt, %12, %14 : i32
    %c128_i32_7 = arith.constant 128 : i32
    %16 = arith.addi %12, %c128_i32_7 : i32
    %17 = arith.cmpi slt, %13, %16 : i32
    %18 = arith.andi %15, %17 : i1
    %c0_i32_8 = arith.constant 0 : i32
    %19 = arith.cmpi sge, %arg1, %c0_i32_8 : i32
    %20 = arith.ori %18, %19 : i1
    %21 = arith.extui %20 : i1 to i32
    %c0_i32_9 = arith.constant 0 : i32
    %22 = arith.cmpi ne, %21, %c0_i32_9 : i32
    scf.if %22 {
      %29 = tpu.iota {dimensions = array<i32: 0>} : vector<128x1xi32>
      %30 = vector.broadcast %12 : i32 to vector<128x1xi32>
      %31 = arith.addi %30, %29 : vector<128x1xi32>
      %32 = tpu.iota {dimensions = array<i32: 1>} : vector<1x128xi32>
      %33 = vector.broadcast %13 : i32 to vector<1x128xi32>
      %34 = arith.addi %33, %32 : vector<1x128xi32>
      %c20_i32 = arith.constant 20 : i32
      %35 = vector.broadcast %c20_i32 : i32 to vector<1x128xi32>
      %36 = arith.cmpi slt, %34, %35 : vector<1x128xi32>
      %37 = vector.broadcast %31 : vector<128x1xi32> to vector<128x128xi32>
      %38 = vector.broadcast %34 : vector<1x128xi32> to vector<128x128xi32>
      %39 = arith.cmpi ne, %37, %38 : vector<128x128xi32>
      %40 = vector.broadcast %36 : vector<1x128xi1> to vector<128x128xi1>
      %41 = arith.andi %40, %39 : vector<128x128xi1>
      %c0_13 = arith.constant 0 : index
      %c0_14 = arith.constant 0 : index
      %42 = vector.load %arg5[%c0_13, %c0_14] : memref<128x128xf32, #tpu.memory_space<vmem>>, vector<128x128xf32>
      %cst_15 = arith.constant 0.000000e+00 : f32
      %43 = vector.broadcast %cst_15 : f32 to vector<128x128xf32>
      %44 = arith.select %41, %11, %43 : vector<128x128xi1>, vector<128x128xf32>
      %45 = arith.addf %42, %44 : vector<128x128xf32>
      %c0_16 = arith.constant 0 : index
      %c0_17 = arith.constant 0 : index
      %46 = vector.load %arg5[%c0_16, %c0_17] : memref<128x128xf32, #tpu.memory_space<vmem>>, vector<128x128xf32>
      tpu.vector_store %arg5[%c0_16, %c0_17], %45 {strides = array<i32>} : memref<128x128xf32, #tpu.memory_space<vmem>>, vector<128x128xf32>,
    } else {
    }
    %true = arith.constant true
    %23 = arith.xori %20, %true : i1
    %24 = arith.extui %23 : i1 to i32
    %c0_i32_10 = arith.constant 0 : i32
    %25 = arith.cmpi ne, %24, %c0_i32_10 : i32
    scf.if %25 {
      %c0_13 = arith.constant 0 : index
      %c0_14 = arith.constant 0 : index
      %29 = vector.load %arg5[%c0_13, %c0_14] : memref<128x128xf32, #tpu.memory_space<vmem>>, vector<128x128xf32>
      %30 = arith.addf %29, %11 : vector<128x128xf32>
      %c0_15 = arith.constant 0 : index
      %c0_16 = arith.constant 0 : index
      %31 = vector.load %arg5[%c0_15, %c0_16] : memref<128x128xf32, #tpu.memory_space<vmem>>, vector<128x128xf32>
      tpu.vector_store %arg5[%c0_15, %c0_16], %30 {strides = array<i32>} : memref<128x128xf32, #tpu.memory_space<vmem>>, vector<128x128xf32>,
    } else {
    }
    %c0_i32_11 = arith.constant 0 : i32
    %26 = arith.cmpi eq, %arg1, %c0_i32_11 : i32
    %27 = arith.extui %26 : i1 to i32
    %c0_i32_12 = arith.constant 0 : i32
    %28 = arith.cmpi ne, %27, %c0_i32_12 : i32
    scf.if %28 {
      %c0_13 = arith.constant 0 : index
      %c0_14 = arith.constant 0 : index
      %29 = vector.load %arg5[%c0_13, %c0_14] : memref<128x128xf32, #tpu.memory_space<vmem>>, vector<128x128xf32>
      %cst_15 = arith.constant dense<0.000000e+00> : vector<128xf32>
      %30 = vector.multi_reduction <add>, %29, %cst_15 [1] : vector<128x128xf32> to vector<128xf32>
      %31 = vector.shape_cast %30 : vector<128xf32> to vector<128x1xf32>
      %32 = math.log %31 : vector<128x1xf32>
      %cst_16 = arith.constant 14.2857141 : f32
      %33 = vector.broadcast %cst_16 : f32 to vector<128x1xf32>
      %34 = arith.subf %32, %33 : vector<128x1xf32>
      %c0_17 = arith.constant 0 : index
      %c0_18 = arith.constant 0 : index
      %35 = vector.load %arg4[%c0_17, %c0_18] : memref<128x1xf32, #tpu.memory_space<vmem>>, vector<128x1xf32>
      tpu.vector_store %arg4[%c0_17, %c0_18], %34 {strides = array<i32>} : memref<128x1xf32, #tpu.memory_space<vmem>>, vector<128x1xf32>,
    } else {
    }
    return
  }
  func.func @transform_0(%arg0: i32, %arg1: i32) -> (i32, i32) {
    %c0_i32 = arith.constant 0 : i32
    %c0_i32_0 = arith.constant 0 : i32
    return %arg0, %c0_i32 : i32, i32
  }
  func.func @transform_1(%arg0: i32, %arg1: i32) -> (i32, i32) {
    %c0_i32 = arith.constant 0 : i32
    %c0_i32_0 = arith.constant 0 : i32
    %c0_i32_1 = arith.constant 0 : i32
    return %c0_i32, %c0_i32_0 : i32, i32
  }
  func.func @transform_2(%arg0: i32, %arg1: i32) -> (i32, i32) {
    %c0_i32 = arith.constant 0 : i32
    %c0_i32_0 = arith.constant 0 : i32
    return %arg0, %c0_i32 : i32, i32
  }
}

</mosaic_0001>

<llo_original>
// kernel: tpu_custom_call.1
$region0: #{tpu_custom_call.1}
  #allocation0 [shape = 'u32[]', space=smem, size = 0x4, offset = 0x4, fixed_abs, tag = 'smem constant byte address 0x4 - core index']
  #allocation1 [shape = 'u32[72,128]{1,0:T(1,128)}', space=vmem, size = 0x9000, scoped, tag = 'internal scratch']
  #allocation2 [shape = 'f32[128,128]{1,0:T(8,128)}', space=vmem, size = 0x10000, scoped, tag = 'scratch operand']
  %s0 = inlined_call_operand.hbm [shape: bf16[128,128], index: 0, kind: input, shape index: {}]
  %s1 = inlined_call_operand.hbm [shape: bf16[128,128], index: 1, kind: input, shape index: {}]
  %s2 = inlined_call_operand.vmem [shape: f32[128,1], index: 2, kind: output, shape index: {}]
  %s3 = sld [smem:[#allocation0]]
  $region42: #{tpu_custom_call.1} parent=0
    _
  %s5 = ssub.s32 1, %s3
  %s6 = scalar_select 0, %s5, %s3
  $region1: #{tpu_custom_call.1} parent=0
    #allocation3 [shape = 'u8[32768]{0}', space=vmem, size = 0x8000, scoped, tag = 'input window, operand 0, single buffered']
    #allocation4 [shape = 's32[1]{0}', space=sflag, size = 0x4, scoped, tag = 'scoped memory for tpu_custom_call.1']
    #allocation5 [shape = 'u8[32768]{0}', space=vmem, size = 0x8000, scoped, tag = 'input window, operand 1, single buffered']
    #allocation6 [shape = 's32[1]{0}', space=sflag, size = 0x4, scoped, tag = 'scoped memory for tpu_custom_call.1']
    %7 = vsyncpa [#allocation4], 0
    %8 = vsyncpa [#allocation6], 0
    // Predicated region
    $region2: #{tpu_custom_call.1} parent=1 // pred_check
      _
    $region3: #{tpu_custom_call.1} parent=1 // pred_check_branch
      %10 = sbr.rel (0) target = $region5
    $region4: #{tpu_custom_call.1} parent=1 // pred_region
      %12 = vsyncadd [#allocation4], 0
      %s13 = sshll.u32 %s0, 4
      %s14 = int_to_ptr.hbm [resolvable:$true] %s13
      %s15 = sshll.u32 [#allocation3], 4
      %s16 = int_to_ptr.vmem [resolvable:$true] %s15
      %21 = dma.hbm_to_vmem [thread:$0]  %s14, 1024, %s16, [#allocation4], 64, 64, 4
    $region5: #{tpu_custom_call.1} parent=1 // pred_fallthru
      _
    // Predicated region
    $region6: #{tpu_custom_call.1} parent=1 // pred_check
      _
    $region7: #{tpu_custom_call.1} parent=1 // pred_check_branch
      %23 = sbr.rel (0) target = $region9
    $region8: #{tpu_custom_call.1} parent=1 // pred_region
      %25 = vsyncadd [#allocation6], 0
      %s26 = sshll.u32 %s1, 4
      %s27 = int_to_ptr.hbm [resolvable:$true] %s26
      %s28 = sshll.u32 [#allocation5], 4
      %s29 = int_to_ptr.vmem [resolvable:$true] %s28
      %34 = dma.hbm_to_vmem [thread:$0]  %s27, 1024, %s29, [#allocation6], 64, 64, 4
    $region9: #{tpu_custom_call.1} parent=1 // pred_fallthru
      _
    // Predicated region
    $region10: #{tpu_custom_call.1} parent=1 // pred_check
      _
    $region11: #{tpu_custom_call.1} parent=1 // pred_check_branch
      %36 = sbr.rel (0) target = $region13
    $region12: #{tpu_custom_call.1} parent=1 // pred_region
      %38 = dma.done [#allocation4], 1024
    $region13: #{tpu_custom_call.1} parent=1 // pred_fallthru
      _
    // Predicated region
    $region14: #{tpu_custom_call.1} parent=1 // pred_check
      _
    $region15: #{tpu_custom_call.1} parent=1 // pred_check_branch
      %40 = sbr.rel (0) target = $region17
    $region16: #{tpu_custom_call.1} parent=1 // pred_region
      %42 = dma.done [#allocation6], 1024
    $region17: #{tpu_custom_call.1} parent=1 // pred_fallthru
      _
    %p43 = scmp.eq.s32.totalorder 0, 0
    // Predicated region
    $region18: #{tpu_custom_call.1} parent=1 // pred_check
      %p44 = pneg %p43
    $region19: #{tpu_custom_call.1} parent=1 // pred_check_branch
      %46 = sbr.rel (%p44) target = $region21
    $region20: #{tpu_custom_call.1} parent=1 // pred_region
      %47 = vst [vmem:[#allocation2] sm:$0xff] 0.0
      %48 = vst [vmem:[#allocation2 + $0x8] sm:$0xff] 0.0
      %49 = vst [vmem:[#allocation2 + $0x10] sm:$0xff] 0.0
      %50 = vst [vmem:[#allocation2 + $0x18] sm:$0xff] 0.0
      %51 = vst [vmem:[#allocation2 + $0x20] sm:$0xff] 0.0
      %52 = vst [vmem:[#allocation2 + $0x28] sm:$0xff] 0.0
      %53 = vst [vmem:[#allocation2 + $0x30] sm:$0xff] 0.0
      %54 = vst [vmem:[#allocation2 + $0x38] sm:$0xff] 0.0
      %55 = vst [vmem:[#allocation2 + $0x40] sm:$0xff] 0.0
      %56 = vst [vmem:[#allocation2 + $0x48] sm:$0xff] 0.0
      %57 = vst [vmem:[#allocation2 + $0x50] sm:$0xff] 0.0
      %58 = vst [vmem:[#allocation2 + $0x58] sm:$0xff] 0.0
      %59 = vst [vmem:[#allocation2 + $0x60] sm:$0xff] 0.0
      %60 = vst [vmem:[#allocation2 + $0x68] sm:$0xff] 0.0
      %61 = vst [vmem:[#allocation2 + $0x70] sm:$0xff] 0.0
      %62 = vst [vmem:[#allocation2 + $0x78] sm:$0xff] 0.0
    $region21: #{tpu_custom_call.1} parent=1 // pred_fallthru
      _
    %v63 = vld [vmem:[#allocation3] sm:$0xf]
    %v64 = vld [vmem:[#allocation3 + $0x4] sm:$0xf]
    %v65 = vld [vmem:[#allocation3 + $0x8] sm:$0xf]
    %v66 = vld [vmem:[#allocation3 + $0xc] sm:$0xf]
    %v67 = vld [vmem:[#allocation3 + $0x10] sm:$0xf]
    %v68 = vld [vmem:[#allocation3 + $0x14] sm:$0xf]
    %v69 = vld [vmem:[#allocation3 + $0x18] sm:$0xf]
    %v70 = vld [vmem:[#allocation3 + $0x1c] sm:$0xf]
    %v71 = vld [vmem:[#allocation3 + $0x20] sm:$0xf]
    %v72 = vld [vmem:[#allocation3 + $0x24] sm:$0xf]
    %v73 = vld [vmem:[#allocation3 + $0x28] sm:$0xf]
    %v74 = vld [vmem:[#allocation3 + $0x2c] sm:$0xf]
    %v75 = vld [vmem:[#allocation3 + $0x30] sm:$0xf]
    %v76 = vld [vmem:[#allocation3 + $0x34] sm:$0xf]
    %v77 = vld [vmem:[#allocation3 + $0x38] sm:$0xf]
    %v78 = vld [vmem:[#allocation3 + $0x3c] sm:$0xf]
    %s79 = smul.u32 0, 128
    %s80 = sshra.s32 %s79, 3
    %s81 = sand.u32 %s79, 7
    %s82 = smul.addr %s80, 4
    %s83 = scalar_lea.vmem [#allocation5], %s82
    %v84 = vld [vmem:[%s83] sm:$0xf]
    %v85 = vld [vmem:[%s83 + $0x4] sm:$0xf]
    %v86 = vld [vmem:[%s83 + $0x8] sm:$0xf]
    %v87 = vld [vmem:[%s83 + $0xc] sm:$0xf]
    %v88 = vld [vmem:[%s83 + $0x10] sm:$0xf]
    %v89 = vld [vmem:[%s83 + $0x14] sm:$0xf]
    %v90 = vld [vmem:[%s83 + $0x18] sm:$0xf]
    %v91 = vld [vmem:[%s83 + $0x1c] sm:$0xf]
    %v92 = vld [vmem:[%s83 + $0x20] sm:$0xf]
    %v93 = vld [vmem:[%s83 + $0x24] sm:$0xf]
    %v94 = vld [vmem:[%s83 + $0x28] sm:$0xf]
    %v95 = vld [vmem:[%s83 + $0x2c] sm:$0xf]
    %v96 = vld [vmem:[%s83 + $0x30] sm:$0xf]
    %v97 = vld [vmem:[%s83 + $0x34] sm:$0xf]
    %v98 = vld [vmem:[%s83 + $0x38] sm:$0xf]
    %v99 = vld [vmem:[%s83 + $0x3c] sm:$0xf]
    %v116 = vunpack.c.l.b16 %v63
    %v117 = vunpack.c.l.b16 %v64
    %v118 = vunpack.c.l.b16 %v65
    %v119 = vunpack.c.l.b16 %v66
    %v120 = vunpack.c.l.b16 %v67
    %v121 = vunpack.c.l.b16 %v68
    %v122 = vunpack.c.l.b16 %v69
    %v123 = vunpack.c.l.b16 %v70
    %v124 = vunpack.c.l.b16 %v71
    %v125 = vunpack.c.l.b16 %v72
    %v126 = vunpack.c.l.b16 %v73
    %v127 = vunpack.c.l.b16 %v74
    %v128 = vunpack.c.l.b16 %v75
    %v129 = vunpack.c.l.b16 %v76
    %v130 = vunpack.c.l.b16 %v77
    %v131 = vunpack.c.l.b16 %v78
    %v132 = vpack.c.b16 %v117, %v116
    %v133 = vpack.c.b16 %v119, %v118
    %v134 = vpack.c.b16 %v121, %v120
    %v135 = vpack.c.b16 %v123, %v122
    %v136 = vpack.c.b16 %v125, %v124
    %v137 = vpack.c.b16 %v127, %v126
    %v138 = vpack.c.b16 %v129, %v128
    %v139 = vpack.c.b16 %v131, %v130
    %v164 = vunpack.c.l.b16 %v84
    %v165 = vunpack.c.l.b16 %v85
    %v166 = vunpack.c.l.b16 %v86
    %v167 = vunpack.c.l.b16 %v87
    %v168 = vunpack.c.l.b16 %v88
    %v169 = vunpack.c.l.b16 %v89
    %v170 = vunpack.c.l.b16 %v90
    %v171 = vunpack.c.l.b16 %v91
    %v172 = vunpack.c.l.b16 %v92
    %v173 = vunpack.c.l.b16 %v93
    %v174 = vunpack.c.l.b16 %v94
    %v175 = vunpack.c.l.b16 %v95
    %v176 = vunpack.c.l.b16 %v96
    %v177 = vunpack.c.l.b16 %v97
    %v178 = vunpack.c.l.b16 %v98
    %v179 = vunpack.c.l.b16 %v99
    %v180 = vpack.c.b16 %v165, %v164
    %v181 = vpack.c.b16 %v167, %v166
    %v182 = vpack.c.b16 %v169, %v168
    %v183 = vpack.c.b16 %v171, %v170
    %v184 = vpack.c.b16 %v173, %v172
    %v185 = vpack.c.b16 %v175, %v174
    %v186 = vpack.c.b16 %v177, %v176
    %v187 = vpack.c.b16 %v179, %v178
    %196 = vmatpush.bf16.xpose.msra.mxu0 %v187
    %197 = vmatpush.bf16.xpose.msra.mxu0 %v186
    %198 = vmatpush.bf16.xpose.msra.mxu0 %v185
    %199 = vmatpush.bf16.xpose.msra.mxu0 %v184
    %200 = vmatpush.bf16.xpose.msra.mxu0 %v183
    %201 = vmatpush.bf16.xpose.msra.mxu0 %v182
    %202 = vmatpush.bf16.xpose.msra.mxu0 %v181
    %203 = vmatpush.bf16.xpose.msra.mxu0 %v180
    %204 = vmatmul.bf16.gmra.mxu0 %v132
    %v205 = vpop.f32.mrf.mxu0
    %v206 = vadd.f32 0.0, %v205
    %v207 = vpop.f32.mrf.mxu0
    %v208 = vadd.f32 0.0, %v207
    %209 = vmatmul.bf16.gmra.mxu0 %v133
    %v210 = vpop.f32.mrf.mxu0
    %v211 = vadd.f32 0.0, %v210
    %v212 = vpop.f32.mrf.mxu0
    %v213 = vadd.f32 0.0, %v212
    %214 = vmatmul.bf16.gmra.mxu0 %v134
    %v215 = vpop.f32.mrf.mxu0
    %v216 = vadd.f32 0.0, %v215
    %v217 = vpop.f32.mrf.mxu0
    %v218 = vadd.f32 0.0, %v217
    %219 = vmatmul.bf16.gmra.mxu0 %v135
    %v220 = vpop.f32.mrf.mxu0
    %v221 = vadd.f32 0.0, %v220
    %v222 = vpop.f32.mrf.mxu0
    %v223 = vadd.f32 0.0, %v222
    %224 = vmatmul.bf16.gmra.mxu0 %v136
    %v225 = vpop.f32.mrf.mxu0
    %v226 = vadd.f32 0.0, %v225
    %v227 = vpop.f32.mrf.mxu0
    %v228 = vadd.f32 0.0, %v227
    %229 = vmatmul.bf16.gmra.mxu0 %v137
    %v230 = vpop.f32.mrf.mxu0
    %v231 = vadd.f32 0.0, %v230
    %v232 = vpop.f32.mrf.mxu0
    %v233 = vadd.f32 0.0, %v232
    %234 = vmatmul.bf16.gmra.mxu0 %v138
    %v235 = vpop.f32.mrf.mxu0
    %v236 = vadd.f32 0.0, %v235
    %v237 = vpop.f32.mrf.mxu0
    %v238 = vadd.f32 0.0, %v237
    %239 = vmatmul.bf16.gmra.mxu0 %v139
    %v240 = vpop.f32.mrf.mxu0
    %v241 = vadd.f32 0.0, %v240
    %v242 = vpop.f32.mrf.mxu0
    %v243 = vadd.f32 0.0, %v242
    %244 = vdwg.mxu0
    %v245 = vmul.f32 %v206, 14.285714
    %v246 = vmul.f32 %v208, 14.285714
    %v247 = vmul.f32 %v211, 14.285714
    %v248 = vmul.f32 %v213, 14.285714
    %v249 = vmul.f32 %v216, 14.285714
    %v250 = vmul.f32 %v218, 14.285714
    %v251 = vmul.f32 %v221, 14.285714
    %v252 = vmul.f32 %v223, 14.285714
    %v253 = vmul.f32 %v226, 14.285714
    %v254 = vmul.f32 %v228, 14.285714
    %v255 = vmul.f32 %v231, 14.285714
    %v256 = vmul.f32 %v233, 14.285714
    %v257 = vmul.f32 %v236, 14.285714
    %v258 = vmul.f32 %v238, 14.285714
    %v259 = vmul.f32 %v241, 14.285714
    %v260 = vmul.f32 %v243, 14.285714
    %v261 = vmul.f32 %v245, 1.442695
    %v262 = vpow.pop %v261
    %v263 = vmul.f32 %v246, 1.442695
    %v264 = vpow.pop %v263
    %v265 = vmul.f32 %v247, 1.442695
    %v266 = vpow.pop %v265
    %v267 = vmul.f32 %v248, 1.442695
    %v268 = vpow.pop %v267
    %v269 = vmul.f32 %v249, 1.442695
    %v270 = vpow.pop %v269
    %v271 = vmul.f32 %v250, 1.442695
    %v272 = vpow.pop %v271
    %v273 = vmul.f32 %v251, 1.442695
    %v274 = vpow.pop %v273
    %v275 = vmul.f32 %v252, 1.442695
    %v276 = vpow.pop %v275
    %v277 = vmul.f32 %v253, 1.442695
    %v278 = vpow.pop %v277
    %v279 = vmul.f32 %v254, 1.442695
    %v280 = vpow.pop %v279
    %v281 = vmul.f32 %v255, 1.442695
    %v282 = vpow.pop %v281
    %v283 = vmul.f32 %v256, 1.442695
    %v284 = vpow.pop %v283
    %v285 = vmul.f32 %v257, 1.442695
    %v286 = vpow.pop %v285
    %v287 = vmul.f32 %v258, 1.442695
    %v288 = vpow.pop %v287
    %v289 = vmul.f32 %v259, 1.442695
    %v290 = vpow.pop %v289
    %v291 = vmul.f32 %v260, 1.442695
    %v292 = vpow.pop %v291
    %s293 = smul.u32 0, 128
    %s294 = sadd.s32 %s79, 128
    %p295 = scmp.lt.s32.totalorder %s293, %s294
    %s296 = sadd.s32 %s293, 128
    %p297 = scmp.lt.s32.totalorder %s79, %s296
    %p298 = pnand %p295, %p297
    %p299 = pneg %p298
    %p300 = scmp.ge.s32.totalorder 0, 0
    %p301 = por %p299, %p300
    // Predicated region
    $region22: #{tpu_custom_call.1} parent=1 // pred_check
      %p302 = pneg %p301
    $region23: #{tpu_custom_call.1} parent=1 // pred_check_branch
      %304 = sbr.rel (%p302) target = $region25
    $region24: #{tpu_custom_call.1} parent=1 // pred_region
      %v305 = vlaneseq
      %v306 = vshrl.u32 %v305, 7
      %v307 = vadd.s32 %v306, 8
      %v308 = vadd.s32 %v306, 16
      %v309 = vadd.s32 %v306, 24
      %v310 = vadd.s32 %v306, 32
      %v311 = vadd.s32 %v306, 40
      %v312 = vadd.s32 %v306, 48
      %v313 = vadd.s32 %v306, 56
      %v314 = vadd.s32 %v306, 64
      %v315 = vadd.s32 %v306, 72
      %v316 = vadd.s32 %v306, 80
      %v317 = vadd.s32 %v306, 88
      %v318 = vadd.s32 %v306, 96
      %v319 = vadd.s32 %v306, 104
      %v320 = vadd.s32 %v306, 112
      %v321 = vadd.s32 %v306, 120
      %v322 = vstv %s293
      %v323 = vadd.s32 %v322, %v306
      %v324 = vadd.s32 %v322, %v307
      %v325 = vadd.s32 %v322, %v308
      %v326 = vadd.s32 %v322, %v309
      %v327 = vadd.s32 %v322, %v310
      %v328 = vadd.s32 %v322, %v311
      %v329 = vadd.s32 %v322, %v312
      %v330 = vadd.s32 %v322, %v313
      %v331 = vadd.s32 %v322, %v314
      %v332 = vadd.s32 %v322, %v315
      %v333 = vadd.s32 %v322, %v316
      %v334 = vadd.s32 %v322, %v317
      %v335 = vadd.s32 %v322, %v318
      %v336 = vadd.s32 %v322, %v319
      %v337 = vadd.s32 %v322, %v320
      %v338 = vadd.s32 %v322, %v321
      %v339 = vlaneseq
      %v340 = vand.u32 %v339, 127
      %v341 = vstv %s79
      %v342 = vadd.s32 %v341, %v340
      %vm343 = vcmp.lt.s32.totalorder %v342, 20
      %vm344 = vcmp.ne.s32.totalorder %v323, %v342
      %vm345 = vcmp.ne.s32.totalorder %v324, %v342
      %vm346 = vcmp.ne.s32.totalorder %v325, %v342
      %vm347 = vcmp.ne.s32.totalorder %v326, %v342
      %vm348 = vcmp.ne.s32.totalorder %v327, %v342
      %vm349 = vcmp.ne.s32.totalorder %v328, %v342
      %vm350 = vcmp.ne.s32.totalorder %v329, %v342
      %vm351 = vcmp.ne.s32.totalorder %v330, %v342
      %vm352 = vcmp.ne.s32.totalorder %v331, %v342
      %vm353 = vcmp.ne.s32.totalorder %v332, %v342
      %vm354 = vcmp.ne.s32.totalorder %v333, %v342
      %vm355 = vcmp.ne.s32.totalorder %v334, %v342
      %vm356 = vcmp.ne.s32.totalorder %v335, %v342
      %vm357 = vcmp.ne.s32.totalorder %v336, %v342
      %vm358 = vcmp.ne.s32.totalorder %v337, %v342
      %vm359 = vcmp.ne.s32.totalorder %v338, %v342
      %v360 = vsel %vm343, 1, 0
      %vm361 = vcmp.eq.s32.totalorder %v360, 1
      %vm362 = vmand %vm361, %vm344
      %vm363 = vmand %vm361, %vm345
      %vm364 = vmand %vm361, %vm346
      %vm365 = vmand %vm361, %vm347
      %vm366 = vmand %vm361, %vm348
      %vm367 = vmand %vm361, %vm349
      %vm368 = vmand %vm361, %vm350
      %vm369 = vmand %vm361, %vm351
      %vm370 = vmand %vm361, %vm352
      %vm371 = vmand %vm361, %vm353
      %vm372 = vmand %vm361, %vm354
      %vm373 = vmand %vm361, %vm355
      %vm374 = vmand %vm361, %vm356
      %vm375 = vmand %vm361, %vm357
      %vm376 = vmand %vm361, %vm358
      %vm377 = vmand %vm361, %vm359
      %v378 = vld [vmem:[#allocation2] sm:$0xff]
      %v379 = vld [vmem:[#allocation2 + $0x8] sm:$0xff]
      %v380 = vld [vmem:[#allocation2 + $0x10] sm:$0xff]
      %v381 = vld [vmem:[#allocation2 + $0x18] sm:$0xff]
      %v382 = vld [vmem:[#allocation2 + $0x20] sm:$0xff]
      %v383 = vld [vmem:[#allocation2 + $0x28] sm:$0xff]
      %v384 = vld [vmem:[#allocation2 + $0x30] sm:$0xff]
      %v385 = vld [vmem:[#allocation2 + $0x38] sm:$0xff]
      %v386 = vld [vmem:[#allocation2 + $0x40] sm:$0xff]
      %v387 = vld [vmem:[#allocation2 + $0x48] sm:$0xff]
      %v388 = vld [vmem:[#allocation2 + $0x50] sm:$0xff]
      %v389 = vld [vmem:[#allocation2 + $0x58] sm:$0xff]
      %v390 = vld [vmem:[#allocation2 + $0x60] sm:$0xff]
      %v391 = vld [vmem:[#allocation2 + $0x68] sm:$0xff]
      %v392 = vld [vmem:[#allocation2 + $0x70] sm:$0xff]
      %v393 = vld [vmem:[#allocation2 + $0x78] sm:$0xff]
      %v394 = vsel %vm362, %v262, 0.0
      %v395 = vsel %vm363, %v264, 0.0
      %v396 = vsel %vm364, %v266, 0.0
      %v397 = vsel %vm365, %v268, 0.0
      %v398 = vsel %vm366, %v270, 0.0
      %v399 = vsel %vm367, %v272, 0.0
      %v400 = vsel %vm368, %v274, 0.0
      %v401 = vsel %vm369, %v276, 0.0
      %v402 = vsel %vm370, %v278, 0.0
      %v403 = vsel %vm371, %v280, 0.0
      %v404 = vsel %vm372, %v282, 0.0
      %v405 = vsel %vm373, %v284, 0.0
      %v406 = vsel %vm374, %v286, 0.0
      %v407 = vsel %vm375, %v288, 0.0
      %v408 = vsel %vm376, %v290, 0.0
      %v409 = vsel %vm377, %v292, 0.0
      %v410 = vadd.f32 %v378, %v394
      %v411 = vadd.f32 %v379, %v395
      %v412 = vadd.f32 %v380, %v396
      %v413 = vadd.f32 %v381, %v397
      %v414 = vadd.f32 %v382, %v398
      %v415 = vadd.f32 %v383, %v399
      %v416 = vadd.f32 %v384, %v400
      %v417 = vadd.f32 %v385, %v401
      %v418 = vadd.f32 %v386, %v402
      %v419 = vadd.f32 %v387, %v403
      %v420 = vadd.f32 %v388, %v404
      %v421 = vadd.f32 %v389, %v405
      %v422 = vadd.f32 %v390, %v406
      %v423 = vadd.f32 %v391, %v407
      %v424 = vadd.f32 %v392, %v408
      %v425 = vadd.f32 %v393, %v409
      %426 = vst [vmem:[#allocation2] sm:$0xff] %v410
      %427 = vst [vmem:[#allocation2 + $0x8] sm:$0xff] %v411
      %428 = vst [vmem:[#allocation2 + $0x10] sm:$0xff] %v412
      %429 = vst [vmem:[#allocation2 + $0x18] sm:$0xff] %v413
      %430 = vst [vmem:[#allocation2 + $0x20] sm:$0xff] %v414
      %431 = vst [vmem:[#allocation2 + $0x28] sm:$0xff] %v415
      %432 = vst [vmem:[#allocation2 + $0x30] sm:$0xff] %v416
      %433 = vst [vmem:[#allocation2 + $0x38] sm:$0xff] %v417
      %434 = vst [vmem:[#allocation2 + $0x40] sm:$0xff] %v418
      %435 = vst [vmem:[#allocation2 + $0x48] sm:$0xff] %v419
      %436 = vst [vmem:[#allocation2 + $0x50] sm:$0xff] %v420
      %437 = vst [vmem:[#allocation2 + $0x58] sm:$0xff] %v421
      %438 = vst [vmem:[#allocation2 + $0x60] sm:$0xff] %v422
      %439 = vst [vmem:[#allocation2 + $0x68] sm:$0xff] %v423
      %440 = vst [vmem:[#allocation2 + $0x70] sm:$0xff] %v424
      %441 = vst [vmem:[#allocation2 + $0x78] sm:$0xff] %v425
    $region25: #{tpu_custom_call.1} parent=1 // pred_fallthru
      _
    %p442 = pneg %p301
    // Predicated region
    $region26: #{tpu_custom_call.1} parent=1 // pred_check
      _
    $region27: #{tpu_custom_call.1} parent=1 // pred_check_branch
      %444 = sbr.rel (%p301) target = $region29
    $region28: #{tpu_custom_call.1} parent=1 // pred_region
      %v445 = vld [vmem:[#allocation2] sm:$0xff]
      %v446 = vld [vmem:[#allocation2 + $0x8] sm:$0xff]
      %v447 = vld [vmem:[#allocation2 + $0x10] sm:$0xff]
      %v448 = vld [vmem:[#allocation2 + $0x18] sm:$0xff]
      %v449 = vld [vmem:[#allocation2 + $0x20] sm:$0xff]
      %v450 = vld [vmem:[#allocation2 + $0x28] sm:$0xff]
      %v451 = vld [vmem:[#allocation2 + $0x30] sm:$0xff]
      %v452 = vld [vmem:[#allocation2 + $0x38] sm:$0xff]
      %v453 = vld [vmem:[#allocation2 + $0x40] sm:$0xff]
      %v454 = vld [vmem:[#allocation2 + $0x48] sm:$0xff]
      %v455 = vld [vmem:[#allocation2 + $0x50] sm:$0xff]
      %v456 = vld [vmem:[#allocation2 + $0x58] sm:$0xff]
      %v457 = vld [vmem:[#allocation2 + $0x60] sm:$0xff]
      %v458 = vld [vmem:[#allocation2 + $0x68] sm:$0xff]
      %v459 = vld [vmem:[#allocation2 + $0x70] sm:$0xff]
      %v460 = vld [vmem:[#allocation2 + $0x78] sm:$0xff]
      %v461 = vadd.f32 %v445, %v262
      %v462 = vadd.f32 %v446, %v264
      %v463 = vadd.f32 %v447, %v266
      %v464 = vadd.f32 %v448, %v268
      %v465 = vadd.f32 %v449, %v270
      %v466 = vadd.f32 %v450, %v272
      %v467 = vadd.f32 %v451, %v274
      %v468 = vadd.f32 %v452, %v276
      %v469 = vadd.f32 %v453, %v278
      %v470 = vadd.f32 %v454, %v280
      %v471 = vadd.f32 %v455, %v282
      %v472 = vadd.f32 %v456, %v284
      %v473 = vadd.f32 %v457, %v286
      %v474 = vadd.f32 %v458, %v288
      %v475 = vadd.f32 %v459, %v290
      %v476 = vadd.f32 %v460, %v292
      %477 = vst [vmem:[#allocation2] sm:$0xff] %v461
      %478 = vst [vmem:[#allocation2 + $0x8] sm:$0xff] %v462
      %479 = vst [vmem:[#allocation2 + $0x10] sm:$0xff] %v463
      %480 = vst [vmem:[#allocation2 + $0x18] sm:$0xff] %v464
      %481 = vst [vmem:[#allocation2 + $0x20] sm:$0xff] %v465
      %482 = vst [vmem:[#allocation2 + $0x28] sm:$0xff] %v466
      %483 = vst [vmem:[#allocation2 + $0x30] sm:$0xff] %v467
      %484 = vst [vmem:[#allocation2 + $0x38] sm:$0xff] %v468
      %485 = vst [vmem:[#allocation2 + $0x40] sm:$0xff] %v469
      %486 = vst [vmem:[#allocation2 + $0x48] sm:$0xff] %v470
      %487 = vst [vmem:[#allocation2 + $0x50] sm:$0xff] %v471
      %488 = vst [vmem:[#allocation2 + $0x58] sm:$0xff] %v472
      %489 = vst [vmem:[#allocation2 + $0x60] sm:$0xff] %v473
      %490 = vst [vmem:[#allocation2 + $0x68] sm:$0xff] %v474
      %491 = vst [vmem:[#allocation2 + $0x70] sm:$0xff] %v475
      %492 = vst [vmem:[#allocation2 + $0x78] sm:$0xff] %v476
    $region29: #{tpu_custom_call.1} parent=1 // pred_fallthru
      _
    // Predicated region
    $region30: #{tpu_custom_call.1} parent=1 // pred_check
      %p493 = pneg %p43
    $region31: #{tpu_custom_call.1} parent=1 // pred_check_branch
      %495 = sbr.rel (%p493) target = $region33
    $region32: #{tpu_custom_call.1} parent=1 // pred_region
      %v496 = vld [vmem:[#allocation2] sm:$0xff]
      %v497 = vld [vmem:[#allocation2 + $0x8] sm:$0xff]
      %v498 = vld [vmem:[#allocation2 + $0x10] sm:$0xff]
      %v499 = vld [vmem:[#allocation2 + $0x18] sm:$0xff]
      %v500 = vld [vmem:[#allocation2 + $0x20] sm:$0xff]
      %v501 = vld [vmem:[#allocation2 + $0x28] sm:$0xff]
      %v502 = vld [vmem:[#allocation2 + $0x30] sm:$0xff]
      %v503 = vld [vmem:[#allocation2 + $0x38] sm:$0xff]
      %v504 = vld [vmem:[#allocation2 + $0x40] sm:$0xff]
      %v505 = vld [vmem:[#allocation2 + $0x48] sm:$0xff]
      %v506 = vld [vmem:[#allocation2 + $0x50] sm:$0xff]
      %v507 = vld [vmem:[#allocation2 + $0x58] sm:$0xff]
      %v508 = vld [vmem:[#allocation2 + $0x60] sm:$0xff]
      %v509 = vld [vmem:[#allocation2 + $0x68] sm:$0xff]
      %v510 = vld [vmem:[#allocation2 + $0x70] sm:$0xff]
      %v511 = vld [vmem:[#allocation2 + $0x78] sm:$0xff]
      %512 = vadd.xlane.f32.xlu0 %v496
      %v513 = vpop.xlane.xlu0 %512
      %514 = vadd.xlane.f32.xlu0 %v497
      %v515 = vpop.xlane.xlu0 %514
      %516 = vadd.xlane.f32.xlu0 %v498
      %v517 = vpop.xlane.xlu0 %516
      %518 = vadd.xlane.f32.xlu0 %v499
      %v519 = vpop.xlane.xlu0 %518
      %520 = vadd.xlane.f32.xlu0 %v500
      %v521 = vpop.xlane.xlu0 %520
      %522 = vadd.xlane.f32.xlu0 %v501
      %v523 = vpop.xlane.xlu0 %522
      %524 = vadd.xlane.f32.xlu0 %v502
      %v525 = vpop.xlane.xlu0 %524
      %526 = vadd.xlane.f32.xlu0 %v503
      %v527 = vpop.xlane.xlu0 %526
      %528 = vadd.xlane.f32.xlu0 %v504
      %v529 = vpop.xlane.xlu0 %528
      %530 = vadd.xlane.f32.xlu0 %v505
      %v531 = vpop.xlane.xlu0 %530
      %532 = vadd.xlane.f32.xlu0 %v506
      %v533 = vpop.xlane.xlu0 %532
      %534 = vadd.xlane.f32.xlu0 %v507
      %v535 = vpop.xlane.xlu0 %534
      %536 = vadd.xlane.f32.xlu0 %v508
      %v537 = vpop.xlane.xlu0 %536
      %538 = vadd.xlane.f32.xlu0 %v509
      %v539 = vpop.xlane.xlu0 %538
      %540 = vadd.xlane.f32.xlu0 %v510
      %v541 = vpop.xlane.xlu0 %540
      %542 = vadd.xlane.f32.xlu0 %v511
      %v543 = vpop.xlane.xlu0 %542
      %v544 = vlog2.pop %v513
      %v545 = vmul.f32 %v544, 0.6931472
      %v546 = vlog2.pop %v515
      %v547 = vmul.f32 %v546, 0.6931472
      %v548 = vlog2.pop %v517
      %v549 = vmul.f32 %v548, 0.6931472
      %v550 = vlog2.pop %v519
      %v551 = vmul.f32 %v550, 0.6931472
      %v552 = vlog2.pop %v521
      %v553 = vmul.f32 %v552, 0.6931472
      %v554 = vlog2.pop %v523
      %v555 = vmul.f32 %v554, 0.6931472
      %v556 = vlog2.pop %v525
      %v557 = vmul.f32 %v556, 0.6931472
      %v558 = vlog2.pop %v527
      %v559 = vmul.f32 %v558, 0.6931472
      %v560 = vlog2.pop %v529
      %v561 = vmul.f32 %v560, 0.6931472
      %v562 = vlog2.pop %v531
      %v563 = vmul.f32 %v562, 0.6931472
      %v564 = vlog2.pop %v533
      %v565 = vmul.f32 %v564, 0.6931472
      %v566 = vlog2.pop %v535
      %v567 = vmul.f32 %v566, 0.6931472
      %v568 = vlog2.pop %v537
      %v569 = vmul.f32 %v568, 0.6931472
      %v570 = vlog2.pop %v539
      %v571 = vmul.f32 %v570, 0.6931472
      %v572 = vlog2.pop %v541
      %v573 = vmul.f32 %v572, 0.6931472
      %v574 = vlog2.pop %v543
      %v575 = vmul.f32 %v574, 0.6931472
      %v576 = vsub.f32 %v545, 14.285714
      %v577 = vsub.f32 %v547, 14.285714
      %v578 = vsub.f32 %v549, 14.285714
      %v579 = vsub.f32 %v551, 14.285714
      %v580 = vsub.f32 %v553, 14.285714
      %v581 = vsub.f32 %v555, 14.285714
      %v582 = vsub.f32 %v557, 14.285714
      %v583 = vsub.f32 %v559, 14.285714
      %v584 = vsub.f32 %v561, 14.285714
      %v585 = vsub.f32 %v563, 14.285714
      %v586 = vsub.f32 %v565, 14.285714
      %v587 = vsub.f32 %v567, 14.285714
      %v588 = vsub.f32 %v569, 14.285714
      %v589 = vsub.f32 %v571, 14.285714
      %v590 = vsub.f32 %v573, 14.285714
      %v591 = vsub.f32 %v575, 14.285714
      %vm592 = vcmask 7168
      %593 = vst.msk [vmem:[%s2] sm:$0xff] %vm592, %v576
      %594 = vst.msk [vmem:[%s2 + $0x8] sm:$0xff] %vm592, %v577
      %595 = vst.msk [vmem:[%s2 + $0x10] sm:$0xff] %vm592, %v578
      %596 = vst.msk [vmem:[%s2 + $0x18] sm:$0xff] %vm592, %v579
      %597 = vst.msk [vmem:[%s2 + $0x20] sm:$0xff] %vm592, %v580
      %598 = vst.msk [vmem:[%s2 + $0x28] sm:$0xff] %vm592, %v581
      %599 = vst.msk [vmem:[%s2 + $0x30] sm:$0xff] %vm592, %v582
      %600 = vst.msk [vmem:[%s2 + $0x38] sm:$0xff] %vm592, %v583
      %601 = vst.msk [vmem:[%s2 + $0x40] sm:$0xff] %vm592, %v584
      %602 = vst.msk [vmem:[%s2 + $0x48] sm:$0xff] %vm592, %v585
      %603 = vst.msk [vmem:[%s2 + $0x50] sm:$0xff] %vm592, %v586
      %604 = vst.msk [vmem:[%s2 + $0x58] sm:$0xff] %vm592, %v587
      %605 = vst.msk [vmem:[%s2 + $0x60] sm:$0xff] %vm592, %v588
      %606 = vst.msk [vmem:[%s2 + $0x68] sm:$0xff] %vm592, %v589
      %607 = vst.msk [vmem:[%s2 + $0x70] sm:$0xff] %vm592, %v590
      %608 = vst.msk [vmem:[%s2 + $0x78] sm:$0xff] %vm592, %v591
    $region33: #{tpu_custom_call.1} parent=1 // pred_fallthru
      _
    // Predicated region
    $region34: #{tpu_custom_call.1} parent=1 // pred_check
      _
    $region35: #{tpu_custom_call.1} parent=1 // pred_check_branch
      %610 = sbr.rel (0) target = $region37
    $region36: #{tpu_custom_call.1} parent=1 // pred_region
      _
    $region37: #{tpu_custom_call.1} parent=1 // pred_fallthru
      _
    // Predicated region
    $region38: #{tpu_custom_call.1} parent=1 // pred_check
      _
    $region39: #{tpu_custom_call.1} parent=1 // pred_check_branch
      %612 = sbr.rel (0) target = $region41
    $region40: #{tpu_custom_call.1} parent=1 // pred_region
      _
    $region41: #{tpu_custom_call.1} parent=1 // pred_fallthru
      _
    %613 = vsyncpa [#allocation4], 1
    %614 = vsyncpa [#allocation6], 1

</llo_original>
